<compile_context>
chip_gen: v5e
topology: v5e:2x2
jax: 0.10.0
libtpu: 0.0.40
codegen_flags: <defaults>
</compile_context>

<pallas_src>
import jax
import jax.numpy as jnp
from jax.experimental import pallas as pl
from jax.experimental.pallas import tpu as pltpu

IN_FEATURES = 30
HIDDEN = 100
OUT_FEATURES = 1
BN_EPS = 1e-5


def net_kernel(x_ref, w1_ref, b1_ref, w2_ref, b2_ref, o_ref):
    # ---- Linear(30, 100) + Sigmoid ----
    x = x_ref[...]                                                 # [tb, 30]
    h = jnp.dot(x, w1_ref[...], preferred_element_type=jnp.float32)
    h = jax.nn.sigmoid(h + b1_ref[...])                            # [tb, 100] f32

    # ---- Dropout(0.5): identity in eval mode ----
    # ---- BatchNorm1d(100): folded into (w2_ref, b2_ref) at trace time ----

    # ---- Linear(100, 1) -> Dropout (identity) -> Sigmoid, lane-dense ----
    # Contract the hidden axis of h against the w2' row (trans-B matmul):
    # [1, 100] x [tb, 100]^T -> [1, tb]; batch lands on the lane axis.
    y = jax.lax.dot_general(
        w2_ref[...], h,
        dimension_numbers=(((1,), (1,)), ((), ())),
        preferred_element_type=jnp.float32)                        # [1, tb]
    o_ref[...] = jax.nn.sigmoid(y + b2_ref[...])                   # [1, tb]


def net_forward(x, params, *, block_b=2048, dimension_semantics=("parallel",)):
    """x: [B, 30] (f32 or bf16) -> [B, 1] f32 (eval-mode forward of `Net`).

    On v7x pass dimension_semantics=(pltpu.CORE_PARALLEL,) so the two
    TensorCores split the batch grid axis; default "parallel" is portable.
    """
    (w1, b1, gamma, beta, rm, rv, w2, b2) = params
    B = x.shape[0]

    # ---- Fold eval-mode BatchNorm affine into the second Linear ----
    # BN(h) = h*scale + shift  =>  BN(h)@w2 + b2 = h@(w2*scale.T) + (shift@w2 + b2)
    scale = gamma * jax.lax.rsqrt(rv + BN_EPS)          # [1, HIDDEN]
    shift = beta - rm * scale                           # [1, HIDDEN]
    w2_row = (w2 * scale.T).T                           # [1, HIDDEN] (row form)
    b2_f = b2 + shift @ w2                              # [1, 1]

    # Match the streaming dtype of x (pass bf16 x to halve HBM traffic on v5e).
    w1c = w1.astype(x.dtype)

    # Batch tile: single full-array block for small B (always a legal block),
    # otherwise a multiple-of-128 tile so the lane-dense output block tiles
    # evenly (no masked stores on the output path).
    if B <= block_b:
        tb = B
    else:
        tb = max(128, (block_b // 128) * 128)
    grid_b = pl.cdiv(B, tb)
    b_padded = grid_b * tb

    out_row = pl.pallas_call(
        net_kernel,
        out_shape=jax.ShapeDtypeStruct((1, b_padded), jnp.float32),
        grid=(grid_b,),
        in_specs=[
            pl.BlockSpec((tb, IN_FEATURES), lambda i: (i, 0)),       # x tile (streamed)
            pl.BlockSpec((IN_FEATURES, HIDDEN), lambda i: (0, 0)),   # w1      (resident)
            pl.BlockSpec((1, HIDDEN), lambda i: (0, 0)),             # b1      (resident)
            pl.BlockSpec((1, HIDDEN), lambda i: (0, 0)),             # w2' row (resident)
            pl.BlockSpec((1, OUT_FEATURES), lambda i: (0, 0)),       # b2'     (resident)
        ],
        out_specs=pl.BlockSpec((1, tb), lambda i: (0, i)),           # lane-dense row tile
        compiler_params=pltpu.CompilerParams(
            dimension_semantics=tuple(dimension_semantics),
        ),
    )(x, w1c, b1, w2_row, b2_f)

    # (1, padded_B) lane-dense kernel output -> (B, 1) module output.
    return out_row[0, :B].reshape(B, OUT_FEATURES)


def init_params(key):
    """Deterministic init mimicking PyTorch defaults (U(-1/sqrt(fan_in), ...))."""
    k1, k2, k3, k4 = jax.random.split(key, 4)
    lim1 = 1.0 / jnp.sqrt(jnp.float32(IN_FEATURES))
    lim2 = 1.0 / jnp.sqrt(jnp.float32(HIDDEN))
    # Stored as [in, out] (transposed vs. torch's [out, in]) for row-major matmul.
    w1 = jax.random.uniform(k1, (IN_FEATURES, HIDDEN), jnp.float32, -lim1, lim1)
    b1 = jax.random.uniform(k2, (1, HIDDEN), jnp.float32, -lim1, lim1)
    w2 = jax.random.uniform(k3, (HIDDEN, OUT_FEATURES), jnp.float32, -lim2, lim2)
    b2 = jax.random.uniform(k4, (1, OUT_FEATURES), jnp.float32, -lim2, lim2)
    # BatchNorm1d(100) default buffers / affine params.
    gamma = jnp.ones((1, HIDDEN), jnp.float32)
    beta = jnp.zeros((1, HIDDEN), jnp.float32)
    running_mean = jnp.zeros((1, HIDDEN), jnp.float32)
    running_var = jnp.ones((1, HIDDEN), jnp.float32)
    return (w1, b1, gamma, beta, running_mean, running_var, w2, b2)


def reference_forward(x, params):
    """Pure-JAX reference (explicit BN, no folding) for correctness check."""
    (w1, b1, gamma, beta, rm, rv, w2, b2) = params
    x = x.astype(jnp.float32)
    h = jax.nn.sigmoid(x @ w1 + b1)
    h = (h - rm) / jnp.sqrt(rv + BN_EPS) * gamma + beta
    return jax.nn.sigmoid(h @ w2 + b2)


if __name__ == "__main__":
    key = jax.random.PRNGKey(0)
    kp, kx1, kx2, kx3 = jax.random.split(key, 4)
    params = init_params(kp)

    # Small, single-tile case (block == full array).
    B1 = 8
    x1 = jax.random.normal(kx1, (B1, IN_FEATURES), jnp.float32)
    out1 = jax.block_until_ready(net_forward(x1, params))
    ref1 = reference_forward(x1, params)
    assert out1.shape == (B1, OUT_FEATURES), out1.shape
    assert jnp.allclose(out1, ref1, atol=1e-5, rtol=1e-5)

    # Multi-step grid with a partial last x block (exercises tiling + padded
    # lane-dense output path).
    B2 = 300
    x2 = jax.random.normal(kx2, (B2, IN_FEATURES), jnp.float32)
    out2 = jax.block_until_ready(net_forward(x2, params, block_b=128))
    ref2 = reference_forward(x2, params)
    assert out2.shape == (B2, OUT_FEATURES), out2.shape
    assert jnp.allclose(out2, ref2, atol=1e-5, rtol=1e-5)

    # bf16 x streaming path (halves the dominant HBM read — v5e win).
    B3 = 256
    x3 = jax.random.normal(kx3, (B3, IN_FEATURES), jnp.float32).astype(jnp.bfloat16)
    out3 = jax.block_until_ready(net_forward(x3, params, block_b=128))
    ref3 = reference_forward(x3, params)
    assert out3.shape == (B3, OUT_FEATURES), out3.shape
    assert jnp.allclose(out3, ref3, atol=2e-2, rtol=2e-2)

    print("KERNEL_OK")
</pallas_src>

<mosaic_0001>
module attributes {stable_mosaic.version = 11 : i64} {
  func.func @net_kernel(%arg0: i32, %arg1: memref<8x30xf32, #tpu.memory_space<vmem>>, %arg2: memref<30x100xf32, #tpu.memory_space<vmem>>, %arg3: memref<1x100xf32, #tpu.memory_space<vmem>>, %arg4: memref<1x100xf32, #tpu.memory_space<vmem>>, %arg5: memref<1x1xf32, #tpu.memory_space<vmem>>, %arg6: memref<1x8xf32, #tpu.memory_space<vmem>>) attributes {dimension_semantics = [#tpu.dimension_semantics<parallel>], iteration_bounds = array<i64: 1>, scalar_prefetch = 0 : i64, scratch_operands = 0 : i64, tpu.core_type = #tpu.core_type<tc>, window_params = [{transform_indices = @transform_0, window_bounds = array<i64: 8, 30>}, {pipeline_mode = #tpu.pipeline_mode<synchronous>, transform_indices = @transform_1, window_bounds = array<i64: 30, 100>}, {pipeline_mode = #tpu.pipeline_mode<synchronous>, transform_indices = @transform_2, window_bounds = array<i64: 1, 100>}, {pipeline_mode = #tpu.pipeline_mode<synchronous>, transform_indices = @transform_3, window_bounds = array<i64: 1, 100>}, {pipeline_mode = #tpu.pipeline_mode<synchronous>, transform_indices = @transform_4, window_bounds = array<i64: 1, 1>}, {transform_indices = @transform_5, window_bounds = array<i64: 1, 8>}]} {
    %c0 = arith.constant 0 : index
    %c0_0 = arith.constant 0 : index
    %0 = vector.load %arg1[%c0, %c0_0] : memref<8x30xf32, #tpu.memory_space<vmem>>, vector<8x30xf32>
    %c0_1 = arith.constant 0 : index
    %c0_2 = arith.constant 0 : index
    %1 = vector.load %arg2[%c0_1, %c0_2] : memref<30x100xf32, #tpu.memory_space<vmem>>, vector<30x100xf32>
    %cst = arith.constant dense<0.000000e+00> : vector<8x100xf32>
    %2 = tpu.matmul %0, %1, %cst {dimension_numbers = #tpu.dot_dimension_numbers<[1], [0], [0], [1], [0, 0, 1, 1], [], []>} : vector<8x30xf32>, vector<30x100xf32>, vector<8x100xf32> -> vector<8x100xf32>
    %c0_3 = arith.constant 0 : index
    %c0_4 = arith.constant 0 : index
    %3 = vector.load %arg3[%c0_3, %c0_4] : memref<1x100xf32, #tpu.memory_space<vmem>>, vector<1x100xf32>
    %4 = vector.broadcast %3 : vector<1x100xf32> to vector<8x100xf32>
    %5 = arith.addf %2, %4 : vector<8x100xf32>
    %6 = arith.negf %5 : vector<8x100xf32>
    %7 = math.exp %6 : vector<8x100xf32>
    %cst_5 = arith.constant 1.000000e+00 : f32
    %8 = vector.broadcast %cst_5 : f32 to vector<8x100xf32>
    %9 = arith.addf %8, %7 : vector<8x100xf32>
    %10 = arith.divf %8, %9 : vector<8x100xf32>
    %c0_6 = arith.constant 0 : index
    %c0_7 = arith.constant 0 : index
    %11 = vector.load %arg4[%c0_6, %c0_7] : memref<1x100xf32, #tpu.memory_space<vmem>>, vector<1x100xf32>
    %cst_8 = arith.constant dense<0.000000e+00> : vector<1x8xf32>
    %12 = tpu.matmul %11, %10, %cst_8 {dimension_numbers = #tpu.dot_dimension_numbers<[1], [1], [0], [0], [0, 0, 1, 0], [], []>} : vector<1x100xf32>, vector<8x100xf32>, vector<1x8xf32> -> vector<1x8xf32>
    %c0_9 = arith.constant 0 : index
    %c0_10 = arith.constant 0 : index
    %13 = vector.load %arg5[%c0_9, %c0_10] : memref<1x1xf32, #tpu.memory_space<vmem>>, vector<1x1xf32>
    %14 = vector.broadcast %13 : vector<1x1xf32> to vector<1x8xf32>
    %15 = arith.addf %12, %14 : vector<1x8xf32>
    %16 = arith.negf %15 : vector<1x8xf32>
    %17 = math.exp %16 : vector<1x8xf32>
    %cst_11 = arith.constant 1.000000e+00 : f32
    %18 = vector.broadcast %cst_11 : f32 to vector<1x8xf32>
    %19 = arith.addf %18, %17 : vector<1x8xf32>
    %20 = arith.divf %18, %19 : vector<1x8xf32>
    %c0_12 = arith.constant 0 : index
    %c0_13 = arith.constant 0 : index
    %21 = vector.load %arg6[%c0_12, %c0_13] : memref<1x8xf32, #tpu.memory_space<vmem>>, vector<1x8xf32>
    tpu.vector_store %arg6[%c0_12, %c0_13], %20 {strides = array<i32>} : memref<1x8xf32, #tpu.memory_space<vmem>>, vector<1x8xf32>,
    return
  }
  func.func @transform_0(%arg0: i32) -> (i32, i32) {
    %c0_i32 = arith.constant 0 : i32
    %c0_i32_0 = arith.constant 0 : i32
    return %arg0, %c0_i32 : i32, i32
  }
  func.func @transform_1(%arg0: i32) -> (i32, i32) {
    %c0_i32 = arith.constant 0 : i32
    %c0_i32_0 = arith.constant 0 : i32
    %c0_i32_1 = arith.constant 0 : i32
    return %c0_i32, %c0_i32_0 : i32, i32
  }
  func.func @transform_2(%arg0: i32) -> (i32, i32) {
    %c0_i32 = arith.constant 0 : i32
    %c0_i32_0 = arith.constant 0 : i32
    %c0_i32_1 = arith.constant 0 : i32
    return %c0_i32, %c0_i32_0 : i32, i32
  }
  func.func @transform_3(%arg0: i32) -> (i32, i32) {
    %c0_i32 = arith.constant 0 : i32
    %c0_i32_0 = arith.constant 0 : i32
    %c0_i32_1 = arith.constant 0 : i32
    return %c0_i32, %c0_i32_0 : i32, i32
  }
  func.func @transform_4(%arg0: i32) -> (i32, i32) {
    %c0_i32 = arith.constant 0 : i32
    %c0_i32_0 = arith.constant 0 : i32
    %c0_i32_1 = arith.constant 0 : i32
    return %c0_i32, %c0_i32_0 : i32, i32
  }
  func.func @transform_5(%arg0: i32) -> (i32, i32) {
    %c0_i32 = arith.constant 0 : i32
    %c0_i32_0 = arith.constant 0 : i32
    return %c0_i32, %arg0 : i32, i32
  }
}

</mosaic_0001>

<llo_original>
// kernel: tpu_custom_call.1
$region0: #{tpu_custom_call.1}
  #allocation0 [shape = 'u32[]', space=smem, size = 0x4, offset = 0x4, fixed_abs, tag = 'smem constant byte address 0x4 - core index']
  #allocation1 [shape = 'u32[72,128]{1,0:T(1,128)}', space=vmem, size = 0x9000, scoped, tag = 'internal scratch']
  #allocation2 [shape = 'f32[1,1]{1,0:T(1,128)S(1)}', space=vmem, size = 0x200, scoped, tag = 'scoped memory for tpu_custom_call.1']
  %s0 = inlined_call_operand.hbm [shape: f32[8,30], index: 0, kind: input, shape index: {}]
  %s1 = inlined_call_operand.hbm [shape: f32[30,100], index: 1, kind: input, shape index: {}]
  %s2 = inlined_call_operand.vmem [shape: f32[1,100], index: 2, kind: input, shape index: {}]
  %s3 = inlined_call_operand.vmem [shape: f32[1,100], index: 3, kind: input, shape index: {}]
  %s4 = inlined_call_operand.<no memory space> [shape: f32[1,1], index: 4, kind: input, shape index: {}]
  %s5 = inlined_call_operand.hbm [shape: f32[1,8], index: 5, kind: output, shape index: {}]
  %s6 = sld [smem:[#allocation0]]
  $region38: #{tpu_custom_call.1} parent=0
    _
  %s8 = ssub.s32 1, %s6
  %s9 = scalar_select 0, %s8, %s6
  %v10 = vstv %s4
  %11 = vst [vmem:[#allocation2] sm:$0x1] %v10
  $region1: #{tpu_custom_call.1} parent=0
    #allocation3 [shape = 'u8[4096]{0}', space=vmem, size = 0x1000, scoped, tag = 'input window, operand 0, single buffered']
    #allocation4 [shape = 's32[1]{0}', space=sflag, size = 0x4, scoped, tag = 'scoped memory for tpu_custom_call.1']
    #allocation5 [shape = 's32[1]{0}', space=sflag, size = 0x4, scoped, tag = 'scoped memory for tpu_custom_call.1']
    #allocation6 [shape = 'u8[16384]{0}', space=vmem, size = 0x4000, scoped, tag = 'input window, operand 1, single buffered']
    #allocation7 [shape = 's32[1]{0}', space=sflag, size = 0x4, scoped, tag = 'scoped memory for tpu_custom_call.1']
    #allocation8 [shape = 'u8[512]{0}', space=vmem, size = 0x400, scoped, tag = 'output window, operand 0, single buffered']
    %12 = vsyncpa [#allocation4], 0
    %13 = vsyncpa [#allocation7], 0
    %14 = vsyncpa [#allocation5], 0
    // Predicated region
    $region2: #{tpu_custom_call.1} parent=1 // pred_check
      _
    $region3: #{tpu_custom_call.1} parent=1 // pred_check_branch
      %16 = sbr.rel (0) target = $region5
    $region4: #{tpu_custom_call.1} parent=1 // pred_region
      %18 = vsyncadd [#allocation4], 0
      %s20 = sshll.u32 %s0, 4
      %s21 = int_to_ptr.hbm [resolvable:$true] %s20
      %s22 = sshll.u32 [#allocation3], 4
      %s23 = int_to_ptr.vmem [resolvable:$true] %s22
      %25 = dma.hbm_to_vmem [thread:$0]  %s21, 128, %s23, [#allocation4]
    $region5: #{tpu_custom_call.1} parent=1 // pred_fallthru
      _
    // Predicated region
    $region6: #{tpu_custom_call.1} parent=1 // pred_check
      _
    $region7: #{tpu_custom_call.1} parent=1 // pred_check_branch
      %27 = sbr.rel (0) target = $region9
    $region8: #{tpu_custom_call.1} parent=1 // pred_region
      %29 = vsyncadd [#allocation7], 0
      %s30 = sshll.u32 %s1, 4
      %s31 = int_to_ptr.hbm [resolvable:$true] %s30
      %s32 = sshll.u32 [#allocation6], 4
      %s33 = int_to_ptr.vmem [resolvable:$true] %s32
      %38 = dma.hbm_to_vmem [thread:$0]  %s31, 512, %s33, [#allocation7], 128, 128, 8
    $region9: #{tpu_custom_call.1} parent=1 // pred_fallthru
      _
    // Predicated region
    $region10: #{tpu_custom_call.1} parent=1 // pred_check
      _
    $region11: #{tpu_custom_call.1} parent=1 // pred_check_branch
      %40 = sbr.rel (0) target = $region13
    $region12: #{tpu_custom_call.1} parent=1 // pred_region
      _
    $region13: #{tpu_custom_call.1} parent=1 // pred_fallthru
      _
    // Predicated region
    $region14: #{tpu_custom_call.1} parent=1 // pred_check
      _
    $region15: #{tpu_custom_call.1} parent=1 // pred_check_branch
      %42 = sbr.rel (0) target = $region17
    $region16: #{tpu_custom_call.1} parent=1 // pred_region
      _
    $region17: #{tpu_custom_call.1} parent=1 // pred_fallthru
      _
    // Predicated region
    $region18: #{tpu_custom_call.1} parent=1 // pred_check
      _
    $region19: #{tpu_custom_call.1} parent=1 // pred_check_branch
      %44 = sbr.rel (0) target = $region21
    $region20: #{tpu_custom_call.1} parent=1 // pred_region
      _
    $region21: #{tpu_custom_call.1} parent=1 // pred_fallthru
      _
    // Predicated region
    $region22: #{tpu_custom_call.1} parent=1 // pred_check
      _
    $region23: #{tpu_custom_call.1} parent=1 // pred_check_branch
      %46 = sbr.rel (0) target = $region25
    $region24: #{tpu_custom_call.1} parent=1 // pred_region
      %48 = dma.done [#allocation4], 128
    $region25: #{tpu_custom_call.1} parent=1 // pred_fallthru
      _
    // Predicated region
    $region26: #{tpu_custom_call.1} parent=1 // pred_check
      _
    $region27: #{tpu_custom_call.1} parent=1 // pred_check_branch
      %50 = sbr.rel (0) target = $region29
    $region28: #{tpu_custom_call.1} parent=1 // pred_region
      %52 = dma.done [#allocation7], 512
    $region29: #{tpu_custom_call.1} parent=1 // pred_fallthru
      _
    %v53 = vld [vmem:[#allocation3] sm:$0xff]
    %v54 = vld [vmem:[#allocation6] sm:$0xff]
    %v55 = vld [vmem:[#allocation6 + $0x8] sm:$0xff]
    %v56 = vld [vmem:[#allocation6 + $0x10] sm:$0xff]
    %v57 = vld [vmem:[#allocation6 + $0x18] sm:$0x3f]
    %v58 = vld [vmem:[%s2] sm:$0x1]
    %v60 = vperm.slane %v58, 0
    %vm62 = vcmask 244736
    %v64 = vsel %vm62, %v53, 0
    %vm66 = vcmask 1045504
    %v68 = vsel %vm66, %v57, 0
    %70 = vmatpush.msra.mxu0 0.0
    %71 = vmatpush.msra.mxu0 0.0
    %72 = vmatpush.msra.mxu0 0.0
    %73 = vmatpush.msra.mxu0 0.0
    %74 = vmatpush.msra.mxu0 0.0
    %75 = vmatpush.msra.mxu0 0.0
    %76 = vmatpush.msra.mxu0 0.0
    %77 = vmatpush.msra.mxu0 0.0
    %78 = vmatpush.msra.mxu0 0.0
    %79 = vmatpush.msra.mxu0 0.0
    %80 = vmatpush.msra.mxu0 0.0
    %81 = vmatpush.msra.mxu0 0.0
    %82 = vmatpush.msra.mxu0 %v68
    %83 = vmatpush.msra.mxu0 %v56
    %84 = vmatpush.msra.mxu0 %v55
    %85 = vmatpush.msra.mxu0 %v54
    %86 = vmatmul.f32.gmra.mxu0 %v64
    %v87 = vpop.f32.mrf.mxu0
    %v88 = vadd.f32 %v60, %v87
    %89 = vdwg.mxu0
    %v90 = vxor.u32 %v88, 2147483648
    %v91 = vmul.f32 %v90, 1.442695
    %v92 = vpow.pop %v91
    %v93 = vadd.f32 %v92, 1.0
    %v94 = vrcp.pop %v93
    %v95 = vmul.f32 %v93, %v94
    %v96 = vsub.f32 1.0, %v95
    %v97 = vmul.f32 %v94, %v96
    %v98 = vadd.f32 %v94, %v97
    %vm99 = vweird.f32 %v93
    %vm100 = vweird.f32 %v94
    %vm101 = vmor %vm99, %vm100
    %v102 = vsel %vm101, %v94, %v98
    %v103 = vand.u32 2147483647, %v93
    %vm104 = vcmp.eq.f32.partialorder %v103, 8.507059e+37
    %v105 = vand.u32 %v93, 2147483648
    %v106 = vor.u32 1.1754944e-38, %v105
    %v107 = vsel %vm104, %v106, %v102
    %v108 = vmul.f32 1.0, %v107
    %v109 = vld [vmem:[%s3] sm:$0x1]
    %v110 = vld [vmem:[#allocation2] sm:$0x1]
    %112 = vset.pattern.permute.xlu0 0
    %113 = vperm.xlu0 %112, %v110
    %v114 = vpop.permute.xlu0 %113
    %v116 = vperm.slane %v114, 0
    %vm117 = vcmask 818176
    %v119 = vsel %vm117, %v109, 0
    %v122 = vsel %vm117, %v108, 0
    %124 = vmatpush.xpose.msra.mxu0 0.0
    %125 = vmatpush.xpose.msra.mxu0 0.0
    %126 = vmatpush.xpose.msra.mxu0 0.0
    %127 = vmatpush.xpose.msra.mxu0 0.0
    %128 = vmatpush.xpose.msra.mxu0 0.0
    %129 = vmatpush.xpose.msra.mxu0 0.0
    %130 = vmatpush.xpose.msra.mxu0 0.0
    %131 = vmatpush.xpose.msra.mxu0 0.0
    %132 = vmatpush.xpose.msra.mxu0 0.0
    %133 = vmatpush.xpose.msra.mxu0 0.0
    %134 = vmatpush.xpose.msra.mxu0 0.0
    %135 = vmatpush.xpose.msra.mxu0 0.0
    %136 = vmatpush.xpose.msra.mxu0 0.0
    %137 = vmatpush.xpose.msra.mxu0 0.0
    %138 = vmatpush.xpose.msra.mxu0 0.0
    %139 = vmatpush.xpose.msra.mxu0 %v122
    %140 = vmatmul.f32.gmra.mxu0 %v119
    %v141 = vpop.f32.mrf.mxu0
    %v142 = vadd.f32 %v116, %v141
    %143 = vdwg.mxu0
    %v144 = vxor.u32 %v142, 2147483648
    %v145 = vmul.f32 %v144, 1.442695
    %v146 = vpow.pop %v145
    %v147 = vadd.f32 %v146, 1.0
    %v148 = vrcp.pop %v147
    %v149 = vmul.f32 %v147, %v148
    %v150 = vsub.f32 1.0, %v149
    %v151 = vmul.f32 %v148, %v150
    %v152 = vadd.f32 %v148, %v151
    %vm153 = vweird.f32 %v147
    %vm154 = vweird.f32 %v148
    %vm155 = vmor %vm153, %vm154
    %v156 = vsel %vm155, %v148, %v152
    %v157 = vand.u32 2147483647, %v147
    %vm158 = vcmp.eq.f32.partialorder %v157, 8.507059e+37
    %v159 = vand.u32 %v147, 2147483648
    %v160 = vor.u32 1.1754944e-38, %v159
    %v161 = vsel %vm158, %v160, %v156
    %v162 = vmul.f32 1.0, %v161
    %vm163 = vcmask 57344
    %164 = vst.msk [vmem:[#allocation8] sm:$0x1] %vm163, %v162
    // Predicated region
    $region30: #{tpu_custom_call.1} parent=1 // pred_check
      _
    $region31: #{tpu_custom_call.1} parent=1 // pred_check_branch
      %166 = sbr.rel (0) target = $region33
    $region32: #{tpu_custom_call.1} parent=1 // pred_region
      %168 = vsyncadd [#allocation5], 0
      %s170 = sshll.u32 [#allocation8], 4
      %s171 = int_to_ptr.vmem [resolvable:$true] %s170
      %s172 = sshll.u32 %s5, 4
      %s173 = int_to_ptr.hbm [resolvable:$true] %s172
      %175 = dma.vmem_to_hbm [thread:$0]  %s171, 16, %s173, [#allocation5]
    $region33: #{tpu_custom_call.1} parent=1 // pred_fallthru
      _
    // Predicated region
    $region34: #{tpu_custom_call.1} parent=1 // pred_check
      _
    $region35: #{tpu_custom_call.1} parent=1 // pred_check_branch
      %177 = sbr.rel (0) target = $region37
    $region36: #{tpu_custom_call.1} parent=1 // pred_region
      %179 = dma.done [#allocation5], 16
    $region37: #{tpu_custom_call.1} parent=1 // pred_fallthru
      _
    %180 = vsyncpa [#allocation4], 1
    %181 = vsyncpa [#allocation7], 1
    %182 = vsyncpa [#allocation5], 1

</llo_original>
